<compile_context>
chip_gen: v6e
topology: v6e:2x2x1
jax: 0.10.0
libtpu: 0.0.40
codegen_flags: <defaults>
</compile_context>

<pallas_src>
import jax
import jax.numpy as jnp
from jax.experimental import pallas as pl
from jax.experimental.pallas import tpu as pltpu

# TODO(synk): BertModel('bert-base-uncased') and the graph/self-attention Encoder
# used inside encode() are external pretrained modules not included in the
# provided source; the kernel starts from paramemory = encode(captions).squeeze(0).

_LANE = 128
_SUBLANE = 8


def _round_up(x, m):
    return ((x + m - 1) // m) * m


def _pair_classifier_kernel(a_ref, b_ref, w2_ref, b2_ref, out_ref):
    # a_ref  : (tm, Dp)  row-side pre-activation  x[i] @ W1a^T + b1   (zero-padded)
    # b_ref  : (tn, Dp)  col-side pre-activation  x[j] @ W1b^T        (zero-padded)
    # w2_ref : (Dp, Cp)  Linear2 weight^T, zero-padded
    # b2_ref : (1,  Cp)  Linear2 bias, zero-padded
    # out_ref: (tm, tn, Cp)
    tm, dp = a_ref.shape
    tn = b_ref.shape[0]
    cp = w2_ref.shape[1]

    # tanh(Linear1(concat(x[i], x[j]))) == tanh(a[i] + b[j])  (VPU add + EUP tanh)
    h = jnp.tanh(a_ref[...][:, None, :] + b_ref[...][None, :, :])        # (tm, tn, Dp)

    # Linear2 on the flattened pair tile: one lane-dense MXU matmul, f32 accumulate.
    logits = jnp.dot(h.reshape(tm * tn, dp), w2_ref[...],
                     preferred_element_type=jnp.float32) + b2_ref[...]   # (tm*tn, Cp)
    out_ref[...] = logits.reshape(tm, tn, cp).astype(out_ref.dtype)


def text_encoder_pair_classifier(paramemory, w1, b1, w2, b2, *,
                                 tm=128, tn=128,
                                 compute_dtype=jnp.float32):
    """paramemory: (N, D) f32; w1: (D, 2D); b1: (D,); w2: (C, D); b2: (C,).

    Returns logits (N, N, C) == Classifier(cp_mem) from Text_encoder.forward
    (eval semantics: dropout p=0.0 is identity).

    compute_dtype=jnp.bfloat16 enables the bf16 add/tanh path (v6e / v7x);
    the Linear2 matmul always accumulates in f32.
    """
    N, D = paramemory.shape
    C = w2.shape[0]

    # ---- hoisted projections (identical across all grid steps) — plain-JAX glue ----
    w1a = w1[:, :D]                                    # applied to x[i]
    w1b = w1[:, D:]                                    # applied to x[j]
    a_all = paramemory @ w1a.T + b1                    # (N, D)
    b_all = paramemory @ w1b.T                         # (N, D)

    # ---- padding for lane density / MXU width ----
    Dp = _round_up(D, _LANE)
    Cp = _round_up(C, _LANE)

    # Clamp tiles to the problem size; keep multiples of 8 (sublane granularity).
    tm = _round_up(max(_SUBLANE, min(tm, _round_up(N, _SUBLANE))), _SUBLANE)
    tn = _round_up(max(_SUBLANE, min(tn, _round_up(N, _SUBLANE))), _SUBLANE)
    Ni = _round_up(N, tm)                              # padded row-sentence count
    Nj = _round_up(N, tn)                              # padded col-sentence count

    a_pad = jnp.zeros((Ni, Dp), compute_dtype).at[:N, :D].set(
        a_all.astype(compute_dtype))
    b_pad = jnp.zeros((Nj, Dp), compute_dtype).at[:N, :D].set(
        b_all.astype(compute_dtype))
    w2t = jnp.zeros((Dp, Cp), compute_dtype).at[:D, :C].set(
        w2.T.astype(compute_dtype))
    b2r = jnp.zeros((1, Cp), jnp.float32).at[0, :C].set(b2.astype(jnp.float32))

    grid = (Ni // tm, Nj // tn)

    # ---- VMEM budget: double-buffered blocks + tanh intermediate, capped for v7x ----
    isz = jnp.dtype(compute_dtype).itemsize
    block_bytes = (2 * (tm * Dp + tn * Dp + Dp * Cp + Cp) * isz   # inputs (x2 buf)
                   + 2 * tm * tn * Cp * 4                          # output (x2 buf)
                   + 2 * tm * tn * Dp * isz)                       # h intermediate
    vmem_limit = int(min(max(block_bytes, 32 * 1024 * 1024), 48 * 1024 * 1024))

    out_padded = pl.pallas_call(
        _pair_classifier_kernel,
        out_shape=jax.ShapeDtypeStruct((Ni, Nj, Cp), jnp.float32),
        grid_spec=pltpu.PrefetchScalarGridSpec(
            num_scalar_prefetch=0,
            grid=grid,
            in_specs=[
                pl.BlockSpec((tm, Dp), lambda i, j: (i, 0)),   # a_all row tile
                pl.BlockSpec((tn, Dp), lambda i, j: (j, 0)),   # b_all col tile
                pl.BlockSpec((Dp, Cp), lambda i, j: (0, 0)),   # W2^T (resident)
                pl.BlockSpec((1, Cp), lambda i, j: (0, 0)),    # b2   (resident)
            ],
            out_specs=pl.BlockSpec((tm, tn, Cp), lambda i, j: (i, j, 0)),
        ),
        compiler_params=pltpu.CompilerParams(
            dimension_semantics=("parallel", "parallel"),
            vmem_limit_bytes=vmem_limit),
    )(a_pad, b_pad, w2t, b2r)

    # Slice padded rows/cols/classes back off in the wrapper.
    return out_padded[:N, :N, :C]


def _reference(paramemory, w1, b1, w2, b2):
    """Literal re-statement of the PyTorch forward (eval mode, dropout=identity)."""
    N, D = paramemory.shape
    cp_mem = jnp.concatenate(
        [jnp.broadcast_to(paramemory[:, None, :], (N, N, D)),
         jnp.broadcast_to(paramemory[None, :, :], (N, N, D))], axis=-1)   # (N, N, 2D)
    lin_out = jnp.tanh(cp_mem @ w1.T + b1)
    return lin_out @ w2.T + b2


if __name__ == "__main__":
    # Small, module-consistent shapes: N sentences, d_mlp features, num_classes.
    N, d_mlp, num_classes = 16, 32, 4

    key = jax.random.PRNGKey(0)
    k_x, k_w1, k_b1, k_w2, k_b2 = jax.random.split(key, 5)

    # Deterministic synthetic "paramemory" (output of encode().squeeze(0)) and
    # Classifier params (Linear(2*d_mlp, d_mlp) and Linear(d_mlp, num_classes)).
    paramemory = jax.random.normal(k_x, (N, d_mlp), dtype=jnp.float32)
    w1 = jax.random.normal(k_w1, (d_mlp, 2 * d_mlp), dtype=jnp.float32) * 0.1
    b1 = jax.random.normal(k_b1, (d_mlp,), dtype=jnp.float32) * 0.1
    w2 = jax.random.normal(k_w2, (num_classes, d_mlp), dtype=jnp.float32) * 0.1
    b2 = jax.random.normal(k_b2, (num_classes,), dtype=jnp.float32) * 0.1

    # tm=tn=8 gives a 2x2 (i, j) tile grid at this toy N; defaults are 128 for
    # realistic N, and compute_dtype=jnp.bfloat16 is available for v6e/v7x.
    out = text_encoder_pair_classifier(paramemory, w1, b1, w2, b2, tm=8, tn=8)
    out = jax.block_until_ready(out)

    ref = _reference(paramemory, w1, b1, w2, b2)
    assert out.shape == (N, N, num_classes)
    assert jnp.allclose(out, ref, atol=1e-4, rtol=1e-4), "mismatch vs reference"

    print("KERNEL_OK")
</pallas_src>

<mosaic_0001>
module attributes {stable_mosaic.version = 11 : i64} {
  func.func @_pair_classifier_kernel(%arg0: i32, %arg1: i32, %arg2: memref<8x128xf32, #tpu.memory_space<vmem>>, %arg3: memref<8x128xf32, #tpu.memory_space<vmem>>, %arg4: memref<128x128xf32, #tpu.memory_space<vmem>>, %arg5: memref<1x128xf32, #tpu.memory_space<vmem>>, %arg6: memref<8x8x128xf32, #tpu.memory_space<vmem>>) attributes {dimension_semantics = [#tpu.dimension_semantics<parallel>, #tpu.dimension_semantics<parallel>], iteration_bounds = array<i64: 2, 2>, scalar_prefetch = 0 : i64, scratch_operands = 0 : i64, tpu.core_type = #tpu.core_type<tc>, window_params = [{transform_indices = @transform_0, window_bounds = array<i64: 8, 128>}, {transform_indices = @transform_1, window_bounds = array<i64: 8, 128>}, {pipeline_mode = #tpu.pipeline_mode<synchronous>, transform_indices = @transform_2, window_bounds = array<i64: 128, 128>}, {pipeline_mode = #tpu.pipeline_mode<synchronous>, transform_indices = @transform_3, window_bounds = array<i64: 1, 128>}, {transform_indices = @transform_4, window_bounds = array<i64: 8, 8, 128>}]} {
    %c0 = arith.constant 0 : index
    %c0_0 = arith.constant 0 : index
    %0 = vector.load %arg2[%c0, %c0_0] : memref<8x128xf32, #tpu.memory_space<vmem>>, vector<8x128xf32>
    %1 = vector.shape_cast %0 : vector<8x128xf32> to vector<8x1x128xf32>
    %c0_1 = arith.constant 0 : index
    %c0_2 = arith.constant 0 : index
    %2 = vector.load %arg3[%c0_1, %c0_2] : memref<8x128xf32, #tpu.memory_space<vmem>>, vector<8x128xf32>
    %3 = vector.shape_cast %2 : vector<8x128xf32> to vector<1x8x128xf32>
    %4 = vector.broadcast %1 : vector<8x1x128xf32> to vector<8x8x128xf32>
    %5 = vector.broadcast %3 : vector<1x8x128xf32> to vector<8x8x128xf32>
    %6 = arith.addf %4, %5 : vector<8x8x128xf32>
    %7 = math.tanh %6 : vector<8x8x128xf32>
    %8 = vector.shape_cast %7 : vector<8x8x128xf32> to vector<64x128xf32>
    %c0_3 = arith.constant 0 : index
    %c0_4 = arith.constant 0 : index
    %9 = vector.load %arg4[%c0_3, %c0_4] : memref<128x128xf32, #tpu.memory_space<vmem>>, vector<128x128xf32>
    %cst = arith.constant dense<0.000000e+00> : vector<64x128xf32>
    %10 = tpu.matmul %8, %9, %cst {dimension_numbers = #tpu.dot_dimension_numbers<[1], [0], [0], [1], [0, 0, 1, 1], [], []>} : vector<64x128xf32>, vector<128x128xf32>, vector<64x128xf32> -> vector<64x128xf32>
    %c0_5 = arith.constant 0 : index
    %c0_6 = arith.constant 0 : index
    %11 = vector.load %arg5[%c0_5, %c0_6] : memref<1x128xf32, #tpu.memory_space<vmem>>, vector<1x128xf32>
    %12 = vector.broadcast %11 : vector<1x128xf32> to vector<64x128xf32>
    %13 = arith.addf %10, %12 : vector<64x128xf32>
    %14 = vector.shape_cast %13 : vector<64x128xf32> to vector<8x8x128xf32>
    %c0_7 = arith.constant 0 : index
    %c0_8 = arith.constant 0 : index
    %c0_9 = arith.constant 0 : index
    %15 = vector.load %arg6[%c0_7, %c0_8, %c0_9] : memref<8x8x128xf32, #tpu.memory_space<vmem>>, vector<8x8x128xf32>
    tpu.vector_store %arg6[%c0_7, %c0_8, %c0_9], %14 {strides = array<i32>} : memref<8x8x128xf32, #tpu.memory_space<vmem>>, vector<8x8x128xf32>,
    return
  }
  func.func @transform_0(%arg0: i32, %arg1: i32) -> (i32, i32) {
    %c0_i32 = arith.constant 0 : i32
    %c0_i32_0 = arith.constant 0 : i32
    return %arg0, %c0_i32 : i32, i32
  }
  func.func @transform_1(%arg0: i32, %arg1: i32) -> (i32, i32) {
    %c0_i32 = arith.constant 0 : i32
    %c0_i32_0 = arith.constant 0 : i32
    return %arg1, %c0_i32 : i32, i32
  }
  func.func @transform_2(%arg0: i32, %arg1: i32) -> (i32, i32) {
    %c0_i32 = arith.constant 0 : i32
    %c0_i32_0 = arith.constant 0 : i32
    %c0_i32_1 = arith.constant 0 : i32
    return %c0_i32, %c0_i32_0 : i32, i32
  }
  func.func @transform_3(%arg0: i32, %arg1: i32) -> (i32, i32) {
    %c0_i32 = arith.constant 0 : i32
    %c0_i32_0 = arith.constant 0 : i32
    %c0_i32_1 = arith.constant 0 : i32
    return %c0_i32, %c0_i32_0 : i32, i32
  }
  func.func @transform_4(%arg0: i32, %arg1: i32) -> (i32, i32, i32) {
    %c0_i32 = arith.constant 0 : i32
    %c0_i32_0 = arith.constant 0 : i32
    return %arg0, %arg1, %c0_i32 : i32, i32, i32
  }
}

</mosaic_0001>

<llo_original>
// kernel: tpu_custom_call.1
$region0: #{tpu_custom_call.1}
  #allocation0 [shape = 'u32[]', space=smem, size = 0x4, offset = 0x4, fixed_abs, tag = 'smem constant byte address 0x4 - core index']
  #allocation1 [shape = 'u32[144,128]{1,0:T(1,128)}', space=vmem, size = 0x12000, scoped, tag = 'internal scratch']
  %s0 = inlined_call_operand.hbm [shape: f32[16,128], index: 0, kind: input, shape index: {}]
  %s1 = inlined_call_operand.hbm [shape: f32[16,128], index: 1, kind: input, shape index: {}]
  %s2 = inlined_call_operand.hbm [shape: f32[128,128], index: 2, kind: input, shape index: {}]
  %s3 = inlined_call_operand.vmem [shape: f32[1,128], index: 3, kind: input, shape index: {}]
  %s4 = inlined_call_operand.hbm [shape: f32[16,16,128], index: 4, kind: output, shape index: {}]
  %s5 = sld [smem:[#allocation0]]
  $region61: #{tpu_custom_call.1} parent=0
    _
  %s7 = ssub.s32 1, %s5
  %s8 = scalar_select 0, %s7, %s5
  $region1: #{tpu_custom_call.1} parent=0
    #allocation2 [shape = 'u8[8192]{0}', space=vmem, size = 0x2000, scoped, tag = 'input window, operand 0']
    #allocation3 [shape = 's32[2]{0}', space=sflag, size = 0x8, scoped, tag = 'scoped memory for tpu_custom_call.1']
    #allocation4 [shape = 's32[2]{0}', space=sflag, size = 0x8, scoped, tag = 'scoped memory for tpu_custom_call.1']
    #allocation5 [shape = 'u8[8192]{0}', space=vmem, size = 0x2000, scoped, tag = 'input window, operand 1']
    #allocation6 [shape = 's32[2]{0}', space=sflag, size = 0x8, scoped, tag = 'scoped memory for tpu_custom_call.1']
    #allocation7 [shape = 'u8[65536]{0}', space=vmem, size = 0x10000, scoped, tag = 'input window, operand 2, single buffered']
    #allocation8 [shape = 'u8[65536]{0}', space=vmem, size = 0x10000, scoped, tag = 'output window, operand 0']
    %9 = vsyncpa [#allocation3], 0
    %s10 = scalar_lea.sflag [#allocation3], 1
    %11 = vsyncpa %s10, 0
    %12 = vsyncpa [#allocation6], 0
    %s13 = scalar_lea.sflag [#allocation6], 1
    %14 = vsyncpa %s13, 0
    %15 = vsyncpa [#allocation4], 0
    %s16 = scalar_lea.sflag [#allocation4], 1
    %17 = vsyncpa %s16, 0
    loop: start=0, step=1, limit=6
    $region2: #{tpu_custom_call.1} parent=1 // loop_pre_header
      _
    $region3: #{tpu_custom_call.1} parent=1 // loop_header
      %s19 = sphi 0, %s23
      %p20 = scmp.ge.s32.totalorder %s19, 6
      %s26 = sphi 0, %s38
      %s27 = sphi 0, %s34
      %s28 = sphi 0, %s26
      %s29 = sphi 0, %s27
      %s30 = sphi 0, %s28
      %s31 = sphi 0, %s29
      %s41 = sphi 0, %s43
      %s44 = sphi 0, %s41
      %s45 = sphi 0, %s44
      %s61 = sphi 0, %s45
      %s67 = sphi 0, %s69
      %s70 = sphi 0, %s67
      %s71 = sphi 0, %s70
      %s87 = sphi 0, %s71
      %s91 = sphi 0, %s91
      %s93 = sphi 0, %s91
      %s94 = sphi 0, %s93
      %s108 = sphi 0, %s94
      %s112 = sphi 0, %s112
      %s114 = sphi 0, %s112
      %s115 = sphi 0, %s114
      %s129 = sphi 0, %s115
      %s137 = sphi 0, %s139
      %s140 = sphi 0, %s137
      %s141 = sphi 0, %s140
      %s157 = sphi 0, %s141
    $region4: #{tpu_custom_call.1} parent=1 // loop_header_branch
      %22 = sbr.rel (%p20) target = $region8
    $region5: #{tpu_custom_call.1} parent=1 // loop_body
      %s24 = ssub.s32 %s19, 1
      %s25 = ssub.s32 %s19, 2
      %s32 = sadd.s32 1, %s27
      %p33 = scmp.ge.s32.totalorder %s32, 2
      %s34 = scalar_select %p33, 0, %s32
      %s35 = sadd.s32 1, %s26
      %s36 = scalar_select %p33, %s35, %s26
      %p37 = scmp.ge.s32.totalorder %s36, 2
      %s38 = scalar_select %p37, 0, %s36
      %s39 = ssub.s32 %s26, %s38
      %p40 = scmp.eq.s32.totalorder %s39, 0
      %s42 = sadd.s32 %s41, 1
      %s43 = scalar_select %p40, %s41, %s42
      %p46 = pneg %p40
      %p47 = scmp.eq.s32.totalorder %s19, 3
      %p48 = por %p46, %p47
      %p49 = scmp.ne.s32.totalorder %s41, %s44
      %p50 = scmp.eq.s32.totalorder %s19, 0
      %p51 = por %p49, %p50
      %p52 = scmp.ne.s32.totalorder %s41, %s44
      %p53 = scmp.eq.s32.totalorder %s24, 3
      %p54 = por %p52, %p53
      %p55 = scmp.ne.s32.totalorder %s44, %s45
      %p56 = scmp.eq.s32.totalorder %s24, 0
      %p57 = por %p55, %p56
      %p58 = scmp.ne.s32.totalorder %s44, %s45
      %p59 = scmp.eq.s32.totalorder %s25, 3
      %p60 = por %p58, %p59
      %p62 = scmp.ne.s32.totalorder %s45, %s61
      %p63 = scmp.eq.s32.totalorder %s25, 0
      %p64 = por %p62, %p63
      %s65 = ssub.s32 %s27, %s34
      %p66 = scmp.eq.s32.totalorder %s65, 0
      %s68 = sadd.s32 %s67, 1
      %s69 = scalar_select %p66, %s67, %s68
      %p72 = pneg %p66
      %p73 = scmp.eq.s32.totalorder %s19, 3
      %p74 = por %p72, %p73
      %p75 = scmp.ne.s32.totalorder %s67, %s70
      %p76 = scmp.eq.s32.totalorder %s19, 0
      %p77 = por %p75, %p76
      %p78 = scmp.ne.s32.totalorder %s67, %s70
      %p79 = scmp.eq.s32.totalorder %s24, 3
      %p80 = por %p78, %p79
      %p81 = scmp.ne.s32.totalorder %s70, %s71
      %p82 = scmp.eq.s32.totalorder %s24, 0
      %p83 = por %p81, %p82
      %p84 = scmp.ne.s32.totalorder %s70, %s71
      %p85 = scmp.eq.s32.totalorder %s25, 3
      %p86 = por %p84, %p85
      %p88 = scmp.ne.s32.totalorder %s71, %s87
      %p89 = scmp.eq.s32.totalorder %s25, 0
      %p90 = por %p88, %p89
      %s92 = sadd.s32 %s91, 1
      %p95 = scmp.eq.s32.totalorder %s19, 3
      %p96 = scmp.ne.s32.totalorder %s91, %s93
      %p97 = scmp.eq.s32.totalorder %s19, 0
      %p98 = por %p96, %p97
      %p99 = scmp.ne.s32.totalorder %s91, %s93
      %p100 = scmp.eq.s32.totalorder %s24, 3
      %p101 = por %p99, %p100
      %p102 = scmp.ne.s32.totalorder %s93, %s94
      %p103 = scmp.eq.s32.totalorder %s24, 0
      %p104 = por %p102, %p103
      %p105 = scmp.ne.s32.totalorder %s93, %s94
      %p106 = scmp.eq.s32.totalorder %s25, 3
      %p107 = por %p105, %p106
      %p109 = scmp.ne.s32.totalorder %s94, %s108
      %p110 = scmp.eq.s32.totalorder %s25, 0
      %p111 = por %p109, %p110
      %s113 = sadd.s32 %s112, 1
      %p116 = scmp.eq.s32.totalorder %s19, 3
      %p117 = scmp.ne.s32.totalorder %s112, %s114
      %p118 = scmp.eq.s32.totalorder %s19, 0
      %p119 = por %p117, %p118
      %p120 = scmp.ne.s32.totalorder %s112, %s114
      %p121 = scmp.eq.s32.totalorder %s24, 3
      %p122 = por %p120, %p121
      %p123 = scmp.ne.s32.totalorder %s114, %s115
      %p124 = scmp.eq.s32.totalorder %s24, 0
      %p125 = por %p123, %p124
      %p126 = scmp.ne.s32.totalorder %s114, %s115
      %p127 = scmp.eq.s32.totalorder %s25, 3
      %p128 = por %p126, %p127
      %p130 = scmp.ne.s32.totalorder %s115, %s129
      %p131 = scmp.eq.s32.totalorder %s25, 0
      %p132 = por %p130, %p131
      %s133 = ssub.s32 %s26, %s38
      %s134 = ssub.s32 %s27, %s34
      %s135 = sor.u32 %s133, %s134
      %p136 = scmp.eq.s32.totalorder %s135, 0
      %s138 = sadd.s32 %s137, 1
      %s139 = scalar_select %p136, %s137, %s138
      %p142 = pneg %p136
      %p143 = scmp.eq.s32.totalorder %s19, 3
      %p144 = por %p142, %p143
      %p145 = scmp.ne.s32.totalorder %s137, %s140
      %p146 = scmp.eq.s32.totalorder %s19, 0
      %p147 = por %p145, %p146
      %p148 = scmp.ne.s32.totalorder %s137, %s140
      %p149 = scmp.eq.s32.totalorder %s24, 3
      %p150 = por %p148, %p149
      %p151 = scmp.ne.s32.totalorder %s140, %s141
      %p152 = scmp.eq.s32.totalorder %s24, 0
      %p153 = por %p151, %p152
      %p154 = scmp.ne.s32.totalorder %s140, %s141
      %p155 = scmp.eq.s32.totalorder %s25, 3
      %p156 = por %p154, %p155
      %p158 = scmp.ne.s32.totalorder %s141, %s157
      %p159 = scmp.eq.s32.totalorder %s25, 0
      %p160 = por %p158, %p159
      %p161 = scmp.le.s32.totalorder 1, %s19
      %p162 = scmp.lt.s32.totalorder %s19, 5
      %p163 = pnand %p161, %p162
      %p164 = pneg %p163
      // Predicated region
      $region9: #{tpu_custom_call.1} parent=5 // pred_check
        _
      $region10: #{tpu_custom_call.1} parent=5 // pred_check_branch
        %166 = sbr.rel (%p163) target = $region12
      $region11: #{tpu_custom_call.1} parent=5 // pred_region
        %s167 = ssub.s32 %s19, 1
        // Predicated region
        $region13: #{tpu_custom_call.1} parent=11 // pred_check
          %p168 = pneg %p104
        $region14: #{tpu_custom_call.1} parent=11 // pred_check_branch
          %170 = sbr.rel (%p168) target = $region16
        $region15: #{tpu_custom_call.1} parent=11 // pred_region
          %s172 = ssub.s32 2048, 2048
          %173 = vsyncadd [#allocation6], %s172
          %s174 = sshll.u32 [#allocation7], 4
          %s175 = int_to_ptr.vmem [resolvable:$true] %s174
          %180 = dma.hbm_to_vmem [thread:$0]  %s2, 2048, %s175, [#allocation6], 128, 128, 8
        $region16: #{tpu_custom_call.1} parent=11 // pred_fallthru
          _
        // Predicated region
        $region17: #{tpu_custom_call.1} parent=11 // pred_check
          %p181 = pneg %p125
        $region18: #{tpu_custom_call.1} parent=11 // pred_check_branch
          %183 = sbr.rel (%p181) target = $region20
        $region19: #{tpu_custom_call.1} parent=11 // pred_region
          _
        $region20: #{tpu_custom_call.1} parent=11 // pred_fallthru
          _
      $region12: #{tpu_custom_call.1} parent=5 // pred_fallthru
        _
      %p184 = scmp.lt.s32.totalorder %s19, 4
      // Predicated region
      $region21: #{tpu_custom_call.1} parent=5 // pred_check
        %p185 = pneg %p184
      $region22: #{tpu_custom_call.1} parent=5 // pred_check_branch
        %187 = sbr.rel (%p185) target = $region24
      $region23: #{tpu_custom_call.1} parent=5 // pred_region
        // Predicated region
        $region25: #{tpu_custom_call.1} parent=23 // pred_check
          %p188 = pneg %p51
        $region26: #{tpu_custom_call.1} parent=23 // pred_check_branch
          %190 = sbr.rel (%p188) target = $region28
        $region27: #{tpu_custom_call.1} parent=23 // pred_region
          %s191 = sand.u32 %s41, 1
          %s192 = scalar_lea.sflag [#allocation3], %s191
          %s193 = sand.u32 %s41, 1
          %s194 = smul.addr %s193, 8
          %s195 = scalar_lea.vmem [#allocation2], %s194
          %s197 = ssub.s32 128, 128
          %198 = vsyncadd %s192, %s197
          %s199 = smul.addr %s26, 128
          %s200 = scalar_lea.hbm %s0, %s199
          %s202 = sshll.u32 %s195, 4
          %s203 = int_to_ptr.vmem [resolvable:$true] %s202
          %205 = dma.hbm_to_vmem [thread:$0]  %s200, 128, %s203, %s192
        $region28: #{tpu_custom_call.1} parent=23 // pred_fallthru
          _
        // Predicated region
        $region29: #{tpu_custom_call.1} parent=23 // pred_check
          %p206 = pneg %p77
        $region30: #{tpu_custom_call.1} parent=23 // pred_check_branch
          %208 = sbr.rel (%p206) target = $region32
        $region31: #{tpu_custom_call.1} parent=23 // pred_region
          %s209 = sand.u32 %s19, 1
          %s210 = scalar_lea.sflag [#allocation6], %s209
          %s211 = sand.u32 %s67, 1
          %s212 = smul.addr %s211, 8
          %s213 = scalar_lea.vmem [#allocation5], %s212
          %s215 = ssub.s32 128, 128
          %216 = vsyncadd %s210, %s215
          %s217 = smul.addr %s27, 128
          %s218 = scalar_lea.hbm %s1, %s217
          %s220 = sshll.u32 %s213, 4
          %s221 = int_to_ptr.vmem [resolvable:$true] %s220
          %223 = dma.hbm_to_vmem [thread:$0]  %s218, 128, %s221, %s210
        $region32: #{tpu_custom_call.1} parent=23 // pred_fallthru
          _
      $region24: #{tpu_custom_call.1} parent=5 // pred_fallthru
        _
      %p224 = scmp.le.s32.totalorder 1, %s19
      %p225 = scmp.lt.s32.totalorder %s19, 5
      %p226 = pnand %p224, %p225
      %p227 = pneg %p226
      // Predicated region
      $region33: #{tpu_custom_call.1} parent=5 // pred_check
        _
      $region34: #{tpu_custom_call.1} parent=5 // pred_check_branch
        %229 = sbr.rel (%p226) target = $region36
      $region35: #{tpu_custom_call.1} parent=5 // pred_region
        %s230 = ssub.s32 %s19, 1
        %s231 = sand.u32 %s44, 1
        %s232 = scalar_lea.sflag [#allocation3], %s231
        %s233 = sand.u32 %s44, 1
        %s234 = smul.addr %s233, 8
        %s235 = scalar_lea.vmem [#allocation2], %s234
        // Predicated region
        $region37: #{tpu_custom_call.1} parent=35 // pred_check
          %p236 = pneg %p57
        $region38: #{tpu_custom_call.1} parent=35 // pred_check_branch
          %238 = sbr.rel (%p236) target = $region40
        $region39: #{tpu_custom_call.1} parent=35 // pred_region
          %239 = dma.done %s232, 128
        $region40: #{tpu_custom_call.1} parent=35 // pred_fallthru
          _
        %s240 = sand.u32 %s24, 1
        %s241 = scalar_lea.sflag [#allocation6], %s240
        %s242 = sand.u32 %s70, 1
        %s243 = smul.addr %s242, 8
        %s244 = scalar_lea.vmem [#allocation5], %s243
        // Predicated region
        $region41: #{tpu_custom_call.1} parent=35 // pred_check
          %p245 = pneg %p83
        $region42: #{tpu_custom_call.1} parent=35 // pred_check_branch
          %247 = sbr.rel (%p245) target = $region44
        $region43: #{tpu_custom_call.1} parent=35 // pred_region
          %248 = dma.done %s241, 128
        $region44: #{tpu_custom_call.1} parent=35 // pred_fallthru
          _
        // Predicated region
        $region45: #{tpu_custom_call.1} parent=35 // pred_check
          %p249 = pneg %p104
        $region46: #{tpu_custom_call.1} parent=35 // pred_check_branch
          %251 = sbr.rel (%p249) target = $region48
        $region47: #{tpu_custom_call.1} parent=35 // pred_region
          %252 = dma.done [#allocation6], 2048
        $region48: #{tpu_custom_call.1} parent=35 // pred_fallthru
          _
        %s253 = sand.u32 %s44, 1
        %s254 = scalar_lea.sflag [#allocation3], %s253
        %s255 = sand.u32 %s44, 1
        %s256 = smul.addr %s255, 8
        %s257 = scalar_lea.vmem [#allocation2], %s256
        %p258 = pneg %p57
        %p259 = pneg %p54
        %s260 = sand.u32 %s24, 1
        %s261 = scalar_lea.sflag [#allocation6], %s260
        %s262 = sand.u32 %s70, 1
        %s263 = smul.addr %s262, 8
        %s264 = scalar_lea.vmem [#allocation5], %s263
        %p265 = pneg %p83
        %p266 = pneg %p80
        %p267 = pneg %p104
        %p268 = pneg %p101
        %p269 = pneg %p125
        %p270 = pneg %p122
        %p271 = pneg %p153
        %p272 = pneg %p150
        %s273 = sand.u32 %s140, 1
        %s274 = scalar_lea.sflag [#allocation4], %s273
        %s275 = sand.u32 %s140, 1
        %s276 = smul.addr %s275, 64
        %s277 = scalar_lea.vmem [#allocation8], %s276
        %s278 = smul.u32 8, %s28
        %v279 = vld [vmem:[%s235] sm:$0xff]
        %v281 = vcombine.high %v279, %v279
        %v283 = vunpack.c.l.s4 1966171168
        %v284 = vunpack.c.0.s8 %v283
        %v285 = vlaneseq
        %v286 = vshrl.u32 %v285, 7
        %v287 = vsub.s32 %v284, %v286
        %v288 = vrot.slane %v279, %v287
        %v290 = vunpack.c.l.s4 1966171168
        %v291 = vunpack.c.0.s8 %v290
        %v292 = vlaneseq
        %v293 = vshrl.u32 %v292, 7
        %v294 = vsub.s32 %v291, %v293
        %v295 = vrot.slane %v281, %v294
        %v296 = vcombine.high %v288, %v288
        %v297 = vcombine.high %v295, %v295
        %v299 = vunpack.c.l.s4 1966171168
        %v300 = vunpack.c.0.s8 %v299
        %v301 = vlaneseq
        %v302 = vshrl.u32 %v301, 7
        %v303 = vsub.s32 %v300, %v302
        %v304 = vrot.slane %v288, %v303
        %v306 = vunpack.c.l.s4 1966171168
        %v307 = vunpack.c.0.s8 %v306
        %v308 = vlaneseq
        %v309 = vshrl.u32 %v308, 7
        %v310 = vsub.s32 %v307, %v309
        %v311 = vrot.slane %v295, %v310
        %v313 = vunpack.c.l.s4 1966171168
        %v314 = vunpack.c.0.s8 %v313
        %v315 = vlaneseq
        %v316 = vshrl.u32 %v315, 7
        %v317 = vsub.s32 %v314, %v316
        %v318 = vrot.slane %v296, %v317
        %v320 = vunpack.c.l.s4 1966171168
        %v321 = vunpack.c.0.s8 %v320
        %v322 = vlaneseq
        %v323 = vshrl.u32 %v322, 7
        %v324 = vsub.s32 %v321, %v323
        %v325 = vrot.slane %v297, %v324
        %v326 = vcombine.high %v304, %v304
        %v327 = vcombine.high %v311, %v311
        %v328 = vcombine.high %v318, %v318
        %v329 = vcombine.high %v325, %v325
        %v330 = vld [vmem:[%s244] sm:$0xff]
        %v331 = vlaneseq
        %v332 = vshrl.u32 %v331, 7
        %v333 = vsub.s32 0, %v332
        %v334 = vrot.slane %v304, %v333
        %v335 = vlaneseq
        %v336 = vshrl.u32 %v335, 7
        %v337 = vsub.s32 0, %v336
        %v338 = vrot.slane %v318, %v337
        %v339 = vlaneseq
        %v340 = vshrl.u32 %v339, 7
        %v341 = vsub.s32 0, %v340
        %v342 = vrot.slane %v326, %v341
        %v343 = vlaneseq
        %v344 = vshrl.u32 %v343, 7
        %v345 = vsub.s32 0, %v344
        %v346 = vrot.slane %v328, %v345
        %v347 = vlaneseq
        %v348 = vshrl.u32 %v347, 7
        %v349 = vsub.s32 0, %v348
        %v350 = vrot.slane %v311, %v349
        %v351 = vlaneseq
        %v352 = vshrl.u32 %v351, 7
        %v353 = vsub.s32 0, %v352
        %v354 = vrot.slane %v325, %v353
        %v355 = vlaneseq
        %v356 = vshrl.u32 %v355, 7
        %v357 = vsub.s32 0, %v356
        %v358 = vrot.slane %v327, %v357
        %v359 = vlaneseq
        %v360 = vshrl.u32 %v359, 7
        %v361 = vsub.s32 0, %v360
        %v362 = vrot.slane %v329, %v361
        %v371 = vadd.f32 %v334, %v330
        %v372 = vadd.f32 %v338, %v330
        %v373 = vadd.f32 %v342, %v330
        %v374 = vadd.f32 %v346, %v330
        %v375 = vadd.f32 %v350, %v330
        %v376 = vadd.f32 %v354, %v330
        %v377 = vadd.f32 %v358, %v330
        %v378 = vadd.f32 %v362, %v330
        %v379 = vtanh.pop %v371
        %v380 = vtanh.pop %v372
        %v381 = vtanh.pop %v373
        %v382 = vtanh.pop %v374
        %v383 = vtanh.pop %v375
        %v384 = vtanh.pop %v376
        %v385 = vtanh.pop %v377
        %v386 = vtanh.pop %v378
        %v387 = vld [vmem:[#allocation7] sm:$0xff]
        %v388 = vld [vmem:[#allocation7 + $0x8] sm:$0xff]
        %v389 = vld [vmem:[#allocation7 + $0x10] sm:$0xff]
        %v390 = vld [vmem:[#allocation7 + $0x18] sm:$0xff]
        %v391 = vld [vmem:[#allocation7 + $0x20] sm:$0xff]
        %v392 = vld [vmem:[#allocation7 + $0x28] sm:$0xff]
        %v393 = vld [vmem:[#allocation7 + $0x30] sm:$0xff]
        %v394 = vld [vmem:[#allocation7 + $0x38] sm:$0xff]
        %v395 = vld [vmem:[#allocation7 + $0x40] sm:$0xff]
        %v396 = vld [vmem:[#allocation7 + $0x48] sm:$0xff]
        %v397 = vld [vmem:[#allocation7 + $0x50] sm:$0xff]
        %v398 = vld [vmem:[#allocation7 + $0x58] sm:$0xff]
        %v399 = vld [vmem:[#allocation7 + $0x60] sm:$0xff]
        %v400 = vld [vmem:[#allocation7 + $0x68] sm:$0xff]
        %v401 = vld [vmem:[#allocation7 + $0x70] sm:$0xff]
        %v402 = vld [vmem:[#allocation7 + $0x78] sm:$0xff]
        %v403 = vld [vmem:[%s3] sm:$0x1]
        %v405 = vlaneseq
        %v406 = vshrl.u32 %v405, 7
        %v407 = vsub.s32 0, %v406
        %v408 = vrot.slane %v403, %v407
        %410 = vmatprep.subr.mxu0 0.0
        %411 = vmatpush1.msra.mxu0 %v402
        %412 = vmatprep.subr.mxu0 0.0
        %413 = vmatpush1.msra.mxu0 %v401
        %414 = vmatprep.subr.mxu0 0.0
        %415 = vmatpush1.msra.mxu0 %v400
        %416 = vmatprep.subr.mxu0 0.0
        %417 = vmatpush1.msra.mxu0 %v399
        %418 = vmatprep.subr.mxu0 0.0
        %419 = vmatpush1.msra.mxu0 %v398
        %420 = vmatprep.subr.mxu0 0.0
        %421 = vmatpush1.msra.mxu0 %v397
        %422 = vmatprep.subr.mxu0 0.0
        %423 = vmatpush1.msra.mxu0 %v396
        %424 = vmatprep.subr.mxu0 0.0
        %425 = vmatpush1.msra.mxu0 %v395
        %426 = vmatprep.subr.mxu0 0.0
        %427 = vmatpush1.msra.mxu0 %v394
        %428 = vmatprep.subr.mxu0 0.0
        %429 = vmatpush1.msra.mxu0 %v393
        %430 = vmatprep.subr.mxu0 0.0
        %431 = vmatpush1.msra.mxu0 %v392
        %432 = vmatprep.subr.mxu0 0.0
        %433 = vmatpush1.msra.mxu0 %v391
        %434 = vmatprep.subr.mxu0 0.0
        %435 = vmatpush1.msra.mxu0 %v390
        %436 = vmatprep.subr.mxu0 0.0
        %437 = vmatpush1.msra.mxu0 %v389
        %438 = vmatprep.subr.mxu0 0.0
        %439 = vmatpush1.msra.mxu0 %v388
        %440 = vmatprep.subr.mxu0 0.0
        %441 = vmatpush1.msra.mxu0 %v387
        %442 = vmatprep.subr.mxu0 0.0
        %443 = vmatpush2.msra.mxu0 0.0
        %444 = vmatprep.subr.mxu0 0.0
        %445 = vmatpush2.msra.mxu0 0.0
        %446 = vmatprep.subr.mxu0 0.0
        %447 = vmatpush2.msra.mxu0 0.0
        %448 = vmatprep.subr.mxu0 0.0
        %449 = vmatpush2.msra.mxu0 0.0
        %450 = vmatprep.subr.mxu0 0.0
        %451 = vmatpush2.msra.mxu0 0.0
        %452 = vmatprep.subr.mxu0 0.0
        %453 = vmatpush2.msra.mxu0 0.0
        %454 = vmatprep.subr.mxu0 0.0
        %455 = vmatpush2.msra.mxu0 0.0
        %456 = vmatprep.subr.mxu0 0.0
        %457 = vmatpush2.msra.mxu0 0.0
        %458 = vmatprep.subr.mxu0 0.0
        %459 = vmatpush2.msra.mxu0 0.0
        %460 = vmatprep.subr.mxu0 0.0
        %461 = vmatpush2.msra.mxu0 0.0
        %462 = vmatprep.subr.mxu0 0.0
        %463 = vmatpush2.msra.mxu0 0.0
        %464 = vmatprep.subr.mxu0 0.0
        %465 = vmatpush2.msra.mxu0 0.0
        %466 = vmatprep.subr.mxu0 0.0
        %467 = vmatpush2.msra.mxu0 0.0
        %468 = vmatprep.subr.mxu0 0.0
        %469 = vmatpush2.msra.mxu0 0.0
        %470 = vmatprep.subr.mxu0 0.0
        %471 = vmatpush2.msra.mxu0 0.0
        %472 = vmatprep.subr.mxu0 0.0
        %473 = vmatpush2.msra.mxu0 0.0
        %474 = vmatprep.mubr.f32.mxu0 0.0
        %475 = vmatmul.mubr.f32.gmra.mxu0 %v379
        %v476 = vpop.f32.mrf.mxu0
        %v477 = vadd.f32 %v408, %v476
        %v478 = vpop.f32.mrf.mxu0
        %479 = vmatprep.mubr.f32.mxu0 0.0
        %480 = vmatmul.mubr.f32.gmra.mxu0 %v380
        %v481 = vpop.f32.mrf.mxu0
        %v482 = vadd.f32 %v408, %v481
        %v483 = vpop.f32.mrf.mxu0
        %484 = vmatprep.mubr.f32.mxu0 0.0
        %485 = vmatmul.mubr.f32.gmra.mxu0 %v381
        %v486 = vpop.f32.mrf.mxu0
        %v487 = vadd.f32 %v408, %v486
        %v488 = vpop.f32.mrf.mxu0
        %489 = vmatprep.mubr.f32.mxu0 0.0
        %490 = vmatmul.mubr.f32.gmra.mxu0 %v382
        %v491 = vpop.f32.mrf.mxu0
        %v492 = vadd.f32 %v408, %v491
        %v493 = vpop.f32.mrf.mxu0
        %494 = vmatprep.mubr.f32.mxu0 0.0
        %495 = vmatmul.mubr.f32.gmra.mxu0 %v383
        %v496 = vpop.f32.mrf.mxu0
        %v497 = vadd.f32 %v408, %v496
        %v498 = vpop.f32.mrf.mxu0
        %499 = vmatprep.mubr.f32.mxu0 0.0
        %500 = vmatmul.mubr.f32.gmra.mxu0 %v384
        %v501 = vpop.f32.mrf.mxu0
        %v502 = vadd.f32 %v408, %v501
        %v503 = vpop.f32.mrf.mxu0
        %504 = vmatprep.mubr.f32.mxu0 0.0
        %505 = vmatmul.mubr.f32.gmra.mxu0 %v385
        %v506 = vpop.f32.mrf.mxu0
        %v507 = vadd.f32 %v408, %v506
        %v508 = vpop.f32.mrf.mxu0
        %509 = vmatprep.mubr.f32.mxu0 0.0
        %510 = vmatmul.mubr.f32.gmra.mxu0 %v386
        %v511 = vpop.f32.mrf.mxu0
        %v512 = vadd.f32 %v408, %v511
        %v513 = vpop.f32.mrf.mxu0
        %514 = vdwg.mxu0
        %515 = vst [vmem:[%s277] sm:$0xff] %v477
        %516 = vst [vmem:[%s277 + $0x8] sm:$0xff] %v482
        %517 = vst [vmem:[%s277 + $0x10] sm:$0xff] %v487
        %518 = vst [vmem:[%s277 + $0x18] sm:$0xff] %v492
        %519 = vst [vmem:[%s277 + $0x20] sm:$0xff] %v497
        %520 = vst [vmem:[%s277 + $0x28] sm:$0xff] %v502
        %521 = vst [vmem:[%s277 + $0x30] sm:$0xff] %v507
        %522 = vst [vmem:[%s277 + $0x38] sm:$0xff] %v512
        %s523 = sand.u32 %s140, 1
        %s524 = scalar_lea.sflag [#allocation4], %s523
        %s525 = sand.u32 %s140, 1
        %s526 = smul.addr %s525, 64
        %s527 = scalar_lea.vmem [#allocation8], %s526
        // Predicated region
        $region49: #{tpu_custom_call.1} parent=35 // pred_check
          %p528 = pneg %p150
        $region50: #{tpu_custom_call.1} parent=35 // pred_check_branch
          %530 = sbr.rel (%p528) target = $region52
        $region51: #{tpu_custom_call.1} parent=35 // pred_region
          %s531 = smul.u32 8, %s28
          %s533 = ssub.s32 1024, 1024
          %534 = vsyncadd %s524, %s533
          %s535 = smul.addr %s531, 2
          %s536 = sadd.s32 %s29, %s535
          %s537 = smul.addr %s536, 128
          %s538 = scalar_lea.hbm %s4, %s537
          %s539 = sshll.u32 %s527, 4
          %s540 = int_to_ptr.vmem [resolvable:$true] %s539
          %545 = dma.vmem_to_hbm [thread:$0]  %s540, 1024, %s538, %s524, 128, 256, 8
        $region52: #{tpu_custom_call.1} parent=35 // pred_fallthru
          _
      $region36: #{tpu_custom_call.1} parent=5 // pred_fallthru
        _
      %p546 = scmp.le.s32.totalorder 2, %s19
      // Predicated region
      $region53: #{tpu_custom_call.1} parent=5 // pred_check
        %p547 = pneg %p546
      $region54: #{tpu_custom_call.1} parent=5 // pred_check_branch
        %549 = sbr.rel (%p547) target = $region56
      $region55: #{tpu_custom_call.1} parent=5 // pred_region
        %s550 = ssub.s32 %s19, 2
        // Predicated region
        $region57: #{tpu_custom_call.1} parent=55 // pred_check
          %p551 = pneg %p156
        $region58: #{tpu_custom_call.1} parent=55 // pred_check_branch
          %553 = sbr.rel (%p551) target = $region60
        $region59: #{tpu_custom_call.1} parent=55 // pred_region
          %s554 = sand.u32 %s141, 1
          %s555 = scalar_lea.sflag [#allocation4], %s554
          %s556 = sand.u32 %s141, 1
          %s557 = smul.addr %s556, 64
          %s558 = scalar_lea.vmem [#allocation8], %s557
          %559 = dma.done %s555, 1024
        $region60: #{tpu_custom_call.1} parent=55 // pred_fallthru
          _
      $region56: #{tpu_custom_call.1} parent=5 // pred_fallthru
        _
    $region6: #{tpu_custom_call.1} parent=1 // loop_footer
      %s23 = sadd.s32 1, %s19
    $region7: #{tpu_custom_call.1} parent=1 // loop_footer_branch
      %18 = sbr.rel target = $region3
    $region8: #{tpu_custom_call.1} parent=1 // loop_exit
      _
    %560 = vsyncpa [#allocation3], 1
    %s561 = scalar_lea.sflag [#allocation3], 1
    %562 = vsyncpa %s561, 1
    %563 = vsyncpa [#allocation6], 1
    %s564 = scalar_lea.sflag [#allocation6], 1
    %565 = vsyncpa %s564, 1
    %566 = vsyncpa [#allocation4], 1
    %s567 = scalar_lea.sflag [#allocation4], 1
    %568 = vsyncpa %s567, 1

</llo_original>
